<compile_context>
chip_gen: v5e
topology: v5e:2x2
jax: 0.10.0
libtpu: 0.0.40
codegen_flags: <defaults>
</compile_context>

<pallas_src>
import jax
import jax.numpy as jnp
from jax import lax
from jax.experimental import pallas as pl
from jax.experimental.pallas import tpu as pltpu


def _make_wmse_kernel(tile_rows, n_rows, blocks_per_core, needs_mask):
    """Builds the kernel body (compile-time constants baked in via closure)."""

    def kernel(p_ref, t_ref, w_ref, o_ref, acc_ref):
        c = pl.program_id(0)          # "parallel" axis: one partial per TensorCore
        i = pl.program_id(1)          # "arbitrary" (reduction) axis

        @pl.when(i == 0)
        def _init():
            acc_ref[...] = jnp.zeros_like(acc_ref)

        # Math in f32 regardless of input dtype (bf16 inputs can stay bf16 in HBM).
        d = p_ref[...].astype(jnp.float32) - t_ref[...].astype(jnp.float32)
        contrib = w_ref[...].astype(jnp.float32) * (d * d)   # (tile,1)*(tile,D) broadcasts

        if needs_mask:
            # Zero rows past the real batch (partial tail block / duplicated block).
            row0 = (c * blocks_per_core + i) * tile_rows
            rows = row0 + lax.broadcasted_iota(jnp.int32, (tile_rows, 1), 0)
            contrib = jnp.where(rows < n_rows, contrib, 0.0)

        # Pure-VPU vector accumulation; the expensive cross-lane reduce runs once below.
        acc_ref[...] += contrib

        @pl.when(i == pl.num_programs(1) - 1)
        def _finalize():
            total = jnp.sum(acc_ref[...])
            # Lane-dense (8,128) store; wrapper reads element [0,0] of this core's block.
            o_ref[...] = jnp.full(o_ref.shape, total, dtype=jnp.float32)

    return kernel


def weighted_mse_loss(pred, target, weights, *, target_block_bytes=1 << 20):
    """Pallas equivalent of (weights * (pred - target) ** 2).sum() for 2-D pred."""
    pred = jnp.asarray(pred)
    assert pred.ndim == 2, "kernel expects 2-D (batch, dim) predictions"
    B, D = pred.shape
    target = jnp.broadcast_to(jnp.asarray(target), pred.shape)

    w = jnp.asarray(weights)
    if w.ndim == 2 and w.shape == (B, 1):
        # Per-sample IS weights: keep (B,1) and broadcast in-kernel (~33% less HBM traffic).
        pass
    else:
        w = jnp.broadcast_to(w, pred.shape)
    Dw = w.shape[1]

    # --- tile selection: largest multiple-of-8 row count giving ~target_block_bytes / input ---
    itemsize = max(pred.dtype.itemsize, target.dtype.itemsize)
    rows_budget = max(8, (int(target_block_bytes) // (D * itemsize)) // 8 * 8)
    rows_needed = ((B + 7) // 8) * 8            # B rounded up to a multiple of 8
    tile_rows = min(rows_budget, rows_needed)

    num_blocks = pl.cdiv(B, tile_rows)
    n_split = 2 if num_blocks >= 2 else 1       # v7x: split blocks across the 2 TensorCores
    blocks_per_core = pl.cdiv(num_blocks, n_split)
    needs_mask = (num_blocks * tile_rows != B) or (n_split * blocks_per_core != num_blocks)

    def row_map(c, i):
        # Clamp so a duplicated block (odd block count split over 2 cores) stays
        # in-bounds; its contribution is zeroed by the in-kernel row mask.
        return (jnp.minimum(c * blocks_per_core + i, num_blocks - 1), 0)

    kernel = _make_wmse_kernel(tile_rows, B, blocks_per_core, needs_mask)

    out = pl.pallas_call(
        kernel,
        out_shape=jax.ShapeDtypeStruct((8, 128 * n_split), jnp.float32),
        grid_spec=pltpu.PrefetchScalarGridSpec(
            num_scalar_prefetch=0,
            grid=(n_split, blocks_per_core),
            in_specs=[
                pl.BlockSpec((tile_rows, D), row_map),     # pred
                pl.BlockSpec((tile_rows, D), row_map),     # target
                pl.BlockSpec((tile_rows, Dw), row_map),    # weights: (B,1) or (B,D)
            ],
            out_specs=pl.BlockSpec((8, 128), lambda c, i: (0, c)),
            scratch_shapes=[pltpu.VMEM((tile_rows, D), jnp.float32)],
        ),
        compiler_params=pltpu.CompilerParams(
            dimension_semantics=("parallel", "arbitrary"),
            vmem_limit_bytes=32 * 1024 * 1024,
        ),
    )(pred, target, w)

    # One partial per TensorCore lives at column c*128 of row 0.
    return jnp.sum(out[0, ::128])


if __name__ == "__main__":
    key = jax.random.PRNGKey(0)
    k1, k2, k3, k4, k5, k6 = jax.random.split(key, 6)

    # DQN-with-PER shapes: batch=32, per-action values dim=128, per-sample IS weights.
    B, D = 32, 128
    pred = jax.random.normal(k1, (B, D), dtype=jnp.float32)
    target = jax.random.normal(k2, (B, D), dtype=jnp.float32)
    weights = jax.random.uniform(k3, (B, 1), dtype=jnp.float32)

    loss = weighted_mse_loss(pred, target, weights)
    jax.block_until_ready(loss)
    ref = jnp.sum(weights * (pred - target) ** 2)
    assert jnp.allclose(loss, ref, rtol=1e-5, atol=1e-5), (loss, ref)

    # Second check: non-multiple-of-8 batch, full-shape weights, tiny blocks to
    # exercise the masked tail + two-core split + duplicate-block-clamp paths.
    B2, D2 = 100, 128
    pred2 = jax.random.normal(k4, (B2, D2), dtype=jnp.float32)
    target2 = jax.random.normal(k5, (B2, D2), dtype=jnp.float32)
    weights2 = jax.random.uniform(k6, (B2, D2), dtype=jnp.float32)
    loss2 = weighted_mse_loss(pred2, target2, weights2,
                              target_block_bytes=8 * D2 * 4)  # force 8-row tiles
    jax.block_until_ready(loss2)
    ref2 = jnp.sum(weights2 * (pred2 - target2) ** 2)
    assert jnp.allclose(loss2, ref2, rtol=1e-5, atol=1e-5), (loss2, ref2)

    print("KERNEL_OK")
</pallas_src>

<mosaic_0001>
module attributes {stable_mosaic.version = 11 : i64} {
  func.func @kernel(%arg0: i32, %arg1: i32, %arg2: memref<32x128xf32, #tpu.memory_space<vmem>>, %arg3: memref<32x128xf32, #tpu.memory_space<vmem>>, %arg4: memref<32x1xf32, #tpu.memory_space<vmem>>, %arg5: memref<8x128xf32, #tpu.memory_space<vmem>>, %arg6: memref<32x128xf32, #tpu.memory_space<vmem>>) attributes {dimension_semantics = [#tpu.dimension_semantics<parallel>, #tpu.dimension_semantics<arbitrary>], iteration_bounds = array<i64: 1, 1>, scalar_prefetch = 0 : i64, scratch_operands = 1 : i64, tpu.core_type = #tpu.core_type<tc>, window_params = [{transform_indices = @transform_0, window_bounds = array<i64: 32, 128>}, {transform_indices = @transform_1, window_bounds = array<i64: 32, 128>}, {transform_indices = @transform_2, window_bounds = array<i64: 32, 1>}, {transform_indices = @transform_3, window_bounds = array<i64: 8, 128>}]} {
    %c0_i32 = arith.constant 0 : i32
    %0 = arith.cmpi eq, %arg1, %c0_i32 : i32
    %1 = arith.extui %0 : i1 to i32
    %c0_i32_0 = arith.constant 0 : i32
    %2 = arith.cmpi ne, %1, %c0_i32_0 : i32
    scf.if %2 {
      %cst = arith.constant 0.000000e+00 : f32
      %16 = vector.broadcast %cst : f32 to vector<32x128xf32>
      %c0_12 = arith.constant 0 : index
      %c0_13 = arith.constant 0 : index
      %17 = vector.load %arg6[%c0_12, %c0_13] : memref<32x128xf32, #tpu.memory_space<vmem>>, vector<32x128xf32>
      tpu.vector_store %arg6[%c0_12, %c0_13], %16 {strides = array<i32>} : memref<32x128xf32, #tpu.memory_space<vmem>>, vector<32x128xf32>,
    } else {
    }
    %c0 = arith.constant 0 : index
    %c0_1 = arith.constant 0 : index
    %3 = vector.load %arg2[%c0, %c0_1] : memref<32x128xf32, #tpu.memory_space<vmem>>, vector<32x128xf32>
    %c0_2 = arith.constant 0 : index
    %c0_3 = arith.constant 0 : index
    %4 = vector.load %arg3[%c0_2, %c0_3] : memref<32x128xf32, #tpu.memory_space<vmem>>, vector<32x128xf32>
    %5 = arith.subf %3, %4 : vector<32x128xf32>
    %c0_4 = arith.constant 0 : index
    %c0_5 = arith.constant 0 : index
    %6 = vector.load %arg4[%c0_4, %c0_5] : memref<32x1xf32, #tpu.memory_space<vmem>>, vector<32x1xf32>
    %7 = arith.mulf %5, %5 : vector<32x128xf32>
    %8 = vector.broadcast %6 : vector<32x1xf32> to vector<32x128xf32>
    %9 = arith.mulf %8, %7 : vector<32x128xf32>
    %c0_6 = arith.constant 0 : index
    %c0_7 = arith.constant 0 : index
    %10 = vector.load %arg6[%c0_6, %c0_7] : memref<32x128xf32, #tpu.memory_space<vmem>>, vector<32x128xf32>
    %11 = arith.addf %10, %9 : vector<32x128xf32>
    %c0_8 = arith.constant 0 : index
    %c0_9 = arith.constant 0 : index
    %12 = vector.load %arg6[%c0_8, %c0_9] : memref<32x128xf32, #tpu.memory_space<vmem>>, vector<32x128xf32>
    tpu.vector_store %arg6[%c0_8, %c0_9], %11 {strides = array<i32>} : memref<32x128xf32, #tpu.memory_space<vmem>>, vector<32x128xf32>,
    %c0_i32_10 = arith.constant 0 : i32
    %13 = arith.cmpi eq, %arg1, %c0_i32_10 : i32
    %14 = arith.extui %13 : i1 to i32
    %c0_i32_11 = arith.constant 0 : i32
    %15 = arith.cmpi ne, %14, %c0_i32_11 : i32
    scf.if %15 {
      %c0_12 = arith.constant 0 : index
      %c0_13 = arith.constant 0 : index
      %16 = vector.load %arg6[%c0_12, %c0_13] : memref<32x128xf32, #tpu.memory_space<vmem>>, vector<32x128xf32>
      %17 = vector.shape_cast %16 : vector<32x128xf32> to vector<1x32x128xf32>
      %cst = arith.constant dense<0.000000e+00> : vector<1xf32>
      %18 = vector.multi_reduction <add>, %17, %cst [1, 2] : vector<1x32x128xf32> to vector<1xf32>
      %19 = vector.shape_cast %18 : vector<1xf32> to vector<1x1x1xf32>
      %20 = vector.extract %19[0, 0, 0] : f32 from vector<1x1x1xf32>
      %21 = vector.broadcast %20 : f32 to vector<8x128xf32>
      %c0_14 = arith.constant 0 : index
      %c0_15 = arith.constant 0 : index
      %22 = vector.load %arg5[%c0_14, %c0_15] : memref<8x128xf32, #tpu.memory_space<vmem>>, vector<8x128xf32>
      tpu.vector_store %arg5[%c0_14, %c0_15], %21 {strides = array<i32>} : memref<8x128xf32, #tpu.memory_space<vmem>>, vector<8x128xf32>,
    } else {
    }
    return
  }
  func.func @transform_0(%arg0: i32, %arg1: i32) -> (i32, i32) {
    %c1_i32 = arith.constant 1 : i32
    %0 = arith.muli %arg0, %c1_i32 : i32
    %1 = arith.addi %0, %arg1 : i32
    %c0_i32 = arith.constant 0 : i32
    %2 = arith.minsi %1, %c0_i32 : i32
    %c0_i32_0 = arith.constant 0 : i32
    %c0_i32_1 = arith.constant 0 : i32
    return %2, %c0_i32_0 : i32, i32
  }
  func.func @transform_1(%arg0: i32, %arg1: i32) -> (i32, i32) {
    %c1_i32 = arith.constant 1 : i32
    %0 = arith.muli %arg0, %c1_i32 : i32
    %1 = arith.addi %0, %arg1 : i32
    %c0_i32 = arith.constant 0 : i32
    %2 = arith.minsi %1, %c0_i32 : i32
    %c0_i32_0 = arith.constant 0 : i32
    %c0_i32_1 = arith.constant 0 : i32
    return %2, %c0_i32_0 : i32, i32
  }
  func.func @transform_2(%arg0: i32, %arg1: i32) -> (i32, i32) {
    %c1_i32 = arith.constant 1 : i32
    %0 = arith.muli %arg0, %c1_i32 : i32
    %1 = arith.addi %0, %arg1 : i32
    %c0_i32 = arith.constant 0 : i32
    %2 = arith.minsi %1, %c0_i32 : i32
    %c0_i32_0 = arith.constant 0 : i32
    %c0_i32_1 = arith.constant 0 : i32
    return %2, %c0_i32_0 : i32, i32
  }
  func.func @transform_3(%arg0: i32, %arg1: i32) -> (i32, i32) {
    %c0_i32 = arith.constant 0 : i32
    %c0_i32_0 = arith.constant 0 : i32
    return %c0_i32, %arg0 : i32, i32
  }
}

</mosaic_0001>

<llo_original>
// kernel: tpu_custom_call.1
$region0: #{tpu_custom_call.1}
  #allocation0 [shape = 'u32[]', space=smem, size = 0x4, offset = 0x4, fixed_abs, tag = 'smem constant byte address 0x4 - core index']
  #allocation1 [shape = 'u32[72,128]{1,0:T(1,128)}', space=vmem, size = 0x9000, scoped, tag = 'internal scratch']
  #allocation2 [shape = 'f32[32,128]{1,0:T(8,128)}', space=vmem, size = 0x4000, scoped, tag = 'scratch operand']
  %s0 = inlined_call_operand.vmem [shape: f32[32,128], index: 0, kind: input, shape index: {}]
  %s1 = inlined_call_operand.hbm [shape: f32[32,128], index: 1, kind: input, shape index: {}]
  %s2 = inlined_call_operand.vmem [shape: f32[32,1], index: 2, kind: input, shape index: {}]
  %s3 = inlined_call_operand.hbm [shape: f32[8,128], index: 3, kind: output, shape index: {}]
  %s4 = sld [smem:[#allocation0]]
  $region34: #{tpu_custom_call.1} parent=0
    _
  %s6 = ssub.s32 1, %s4
  %s7 = scalar_select 0, %s6, %s4
  $region1: #{tpu_custom_call.1} parent=0
    #allocation3 [shape = 'u8[16384]{0}', space=vmem, size = 0x4000, scoped, tag = 'input window, operand 1, single buffered']
    #allocation4 [shape = 's32[1]{0}', space=sflag, size = 0x4, scoped, tag = 'scoped memory for tpu_custom_call.1']
    #allocation5 [shape = 's32[1]{0}', space=sflag, size = 0x4, scoped, tag = 'scoped memory for tpu_custom_call.1']
    #allocation6 [shape = 'u8[4096]{0}', space=vmem, size = 0x1000, scoped, tag = 'output window, operand 0, single buffered']
    %8 = vsyncpa [#allocation4], 0
    %9 = vsyncpa [#allocation5], 0
    // Predicated region
    $region2: #{tpu_custom_call.1} parent=1 // pred_check
      _
    $region3: #{tpu_custom_call.1} parent=1 // pred_check_branch
      %11 = sbr.rel (0) target = $region5
    $region4: #{tpu_custom_call.1} parent=1 // pred_region
      %s12 = sadd.s32 0, 0
      %p13 = scmp.lt.s32.totalorder %s12, 0
      %s14 = scalar_select %p13, %s12, 0
      %s15 = smul.u32 4, %s14
      %p16 = scmp.lt.s32.totalorder %s15, 3
      %s17 = scalar_select %p16, %s15, 3
      %s18 = smul.addr %s17, 8
      %s19 = scalar_lea.vmem %s0, %s18
      %s20 = sadd.s32 0, 0
      %p21 = scmp.lt.s32.totalorder %s20, 0
      %s22 = scalar_select %p21, %s20, 0
      %s23 = smul.u32 4, %s22
    $region5: #{tpu_custom_call.1} parent=1 // pred_fallthru
      _
    // Predicated region
    $region6: #{tpu_custom_call.1} parent=1 // pred_check
      _
    $region7: #{tpu_custom_call.1} parent=1 // pred_check_branch
      %25 = sbr.rel (0) target = $region9
    $region8: #{tpu_custom_call.1} parent=1 // pred_region
      %s26 = sadd.s32 0, 0
      %p27 = scmp.lt.s32.totalorder %s26, 0
      %s28 = scalar_select %p27, %s26, 0
      %s29 = smul.u32 4, %s28
      %31 = vsyncadd [#allocation4], 0
      %s32 = smul.addr %s29, 8
      %s33 = scalar_lea.hbm %s1, %s32
      %s34 = sshll.u32 %s33, 4
      %s35 = int_to_ptr.hbm [resolvable:$true] %s34
      %s36 = sshll.u32 [#allocation3], 4
      %s37 = int_to_ptr.vmem [resolvable:$true] %s36
      %42 = dma.hbm_to_vmem [thread:$0]  %s35, 512, %s37, [#allocation4], 128, 128, 8
    $region9: #{tpu_custom_call.1} parent=1 // pred_fallthru
      _
    // Predicated region
    $region10: #{tpu_custom_call.1} parent=1 // pred_check
      _
    $region11: #{tpu_custom_call.1} parent=1 // pred_check_branch
      %44 = sbr.rel (0) target = $region13
    $region12: #{tpu_custom_call.1} parent=1 // pred_region
      %s45 = sadd.s32 0, 0
      %p46 = scmp.lt.s32.totalorder %s45, 0
      %s47 = scalar_select %p46, %s45, 0
      %s48 = smul.u32 4, %s47
      %p49 = scmp.lt.s32.totalorder %s48, 3
      %s50 = scalar_select %p49, %s48, 3
      %s51 = smul.addr %s50, 8
      %s52 = scalar_lea.vmem %s2, %s51
      %s53 = sadd.s32 0, 0
      %p54 = scmp.lt.s32.totalorder %s53, 0
      %s55 = scalar_select %p54, %s53, 0
      %s56 = smul.u32 4, %s55
    $region13: #{tpu_custom_call.1} parent=1 // pred_fallthru
      _
    // Predicated region
    $region14: #{tpu_custom_call.1} parent=1 // pred_check
      _
    $region15: #{tpu_custom_call.1} parent=1 // pred_check_branch
      %58 = sbr.rel (0) target = $region17
    $region16: #{tpu_custom_call.1} parent=1 // pred_region
      %60 = dma.done [#allocation4], 512
    $region17: #{tpu_custom_call.1} parent=1 // pred_fallthru
      _
    %s61 = sadd.s32 0, 0
    %p62 = scmp.lt.s32.totalorder %s61, 0
    %s63 = scalar_select %p62, %s61, 0
    %s64 = smul.u32 4, %s63
    %p65 = scmp.lt.s32.totalorder %s64, 3
    %s66 = scalar_select %p65, %s64, 3
    %s67 = smul.addr %s66, 8
    %s68 = scalar_lea.vmem %s0, %s67
    %s69 = sadd.s32 0, 0
    %p70 = scmp.lt.s32.totalorder %s69, 0
    %s71 = scalar_select %p70, %s69, 0
    %s72 = smul.u32 4, %s71
    %p73 = scmp.lt.s32.totalorder %s72, 3
    %s74 = scalar_select %p73, %s72, 3
    %s75 = smul.addr %s74, 8
    %s76 = scalar_lea.vmem %s2, %s75
    %s77 = sadd.s32 0, 0
    %p78 = scmp.lt.s32.totalorder %s77, 0
    %s79 = scalar_select %p78, %s77, 0
    %s80 = smul.u32 4, %s79
    %p81 = scmp.lt.s32.totalorder %s80, 3
    %s82 = scalar_select %p81, %s80, 3
    %s83 = smul.addr %s82, 8
    %s84 = scalar_lea.vmem %s0, %s83
    %s85 = sadd.s32 0, 0
    %p86 = scmp.lt.s32.totalorder %s85, 0
    %s87 = scalar_select %p86, %s85, 0
    %s88 = smul.u32 4, %s87
    %s89 = sadd.s32 0, 0
    %p90 = scmp.lt.s32.totalorder %s89, 0
    %s91 = scalar_select %p90, %s89, 0
    %s92 = smul.u32 4, %s91
    %s93 = sadd.s32 0, 0
    %p94 = scmp.lt.s32.totalorder %s93, 0
    %s95 = scalar_select %p94, %s93, 0
    %s96 = smul.u32 4, %s95
    %p97 = scmp.lt.s32.totalorder %s96, 3
    %s98 = scalar_select %p97, %s96, 3
    %s99 = smul.addr %s98, 8
    %s100 = scalar_lea.vmem %s2, %s99
    %s101 = sadd.s32 0, 0
    %p102 = scmp.lt.s32.totalorder %s101, 0
    %s103 = scalar_select %p102, %s101, 0
    %s104 = smul.u32 4, %s103
    %p105 = scmp.eq.s32.totalorder 0, 0
    // Predicated region
    $region18: #{tpu_custom_call.1} parent=1 // pred_check
      %p106 = pneg %p105
    $region19: #{tpu_custom_call.1} parent=1 // pred_check_branch
      %108 = sbr.rel (%p106) target = $region21
    $region20: #{tpu_custom_call.1} parent=1 // pred_region
      %109 = vst [vmem:[#allocation2] sm:$0xff] 0.0
      %110 = vst [vmem:[#allocation2 + $0x8] sm:$0xff] 0.0
      %111 = vst [vmem:[#allocation2 + $0x10] sm:$0xff] 0.0
      %112 = vst [vmem:[#allocation2 + $0x18] sm:$0xff] 0.0
    $region21: #{tpu_custom_call.1} parent=1 // pred_fallthru
      _
    %v113 = vld [vmem:[%s84] sm:$0xff]
    %v114 = vld [vmem:[%s84 + $0x8] sm:$0xff]
    %v115 = vld [vmem:[%s84 + $0x10] sm:$0xff]
    %v116 = vld [vmem:[%s84 + $0x18] sm:$0xff]
    %v117 = vld [vmem:[#allocation3] sm:$0xff]
    %v118 = vld [vmem:[#allocation3 + $0x8] sm:$0xff]
    %v119 = vld [vmem:[#allocation3 + $0x10] sm:$0xff]
    %v120 = vld [vmem:[#allocation3 + $0x18] sm:$0xff]
    %v121 = vsub.f32 %v113, %v117
    %v122 = vsub.f32 %v114, %v118
    %v123 = vsub.f32 %v115, %v119
    %v124 = vsub.f32 %v116, %v120
    %v125 = vld [vmem:[%s100] sm:$0xff]
    %v126 = vld [vmem:[%s100 + $0x8] sm:$0xff]
    %v127 = vld [vmem:[%s100 + $0x10] sm:$0xff]
    %v128 = vld [vmem:[%s100 + $0x18] sm:$0xff]
    %v129 = vmul.f32 %v121, %v121
    %v130 = vmul.f32 %v122, %v122
    %v131 = vmul.f32 %v123, %v123
    %v132 = vmul.f32 %v124, %v124
    %134 = vset.pattern.permute.xlu0 0
    %135 = vperm.xlu0 %134, %v125
    %v136 = vpop.permute.xlu0 %135
    %139 = vset.pattern.permute.xlu0 0
    %140 = vperm.xlu0 %139, %v126
    %v141 = vpop.permute.xlu0 %140
    %144 = vset.pattern.permute.xlu0 0
    %145 = vperm.xlu0 %144, %v127
    %v146 = vpop.permute.xlu0 %145
    %149 = vset.pattern.permute.xlu0 0
    %150 = vperm.xlu0 %149, %v128
    %v151 = vpop.permute.xlu0 %150
    %v153 = vmul.f32 %v136, %v129
    %v154 = vmul.f32 %v141, %v130
    %v155 = vmul.f32 %v146, %v131
    %v156 = vmul.f32 %v151, %v132
    %v157 = vld [vmem:[#allocation2] sm:$0xff]
    %v158 = vld [vmem:[#allocation2 + $0x8] sm:$0xff]
    %v159 = vld [vmem:[#allocation2 + $0x10] sm:$0xff]
    %v160 = vld [vmem:[#allocation2 + $0x18] sm:$0xff]
    %v161 = vadd.f32 %v157, %v153
    %v162 = vadd.f32 %v158, %v154
    %v163 = vadd.f32 %v159, %v155
    %v164 = vadd.f32 %v160, %v156
    %165 = vst [vmem:[#allocation2] sm:$0xff] %v161
    %166 = vst [vmem:[#allocation2 + $0x8] sm:$0xff] %v162
    %167 = vst [vmem:[#allocation2 + $0x10] sm:$0xff] %v163
    %168 = vst [vmem:[#allocation2 + $0x18] sm:$0xff] %v164
    // Predicated region
    $region22: #{tpu_custom_call.1} parent=1 // pred_check
      %p169 = pneg %p105
    $region23: #{tpu_custom_call.1} parent=1 // pred_check_branch
      %171 = sbr.rel (%p169) target = $region25
    $region24: #{tpu_custom_call.1} parent=1 // pred_region
      %v172 = vld [vmem:[#allocation2] sm:$0xff]
      %v173 = vld [vmem:[#allocation2 + $0x8] sm:$0xff]
      %v174 = vld [vmem:[#allocation2 + $0x10] sm:$0xff]
      %v175 = vld [vmem:[#allocation2 + $0x18] sm:$0xff]
      %v176 = vadd.f32 %v172, %v173
      %v177 = vadd.f32 %v176, %v174
      %v178 = vadd.f32 %v177, %v175
      %179 = vadd.xlane.f32.xlu0 %v178
      %v180 = vpop.xlane.xlu0 %179
      %v181 = vrot.slane %v180, 4
      %v182 = vadd.f32 %v180, %v181
      %v183 = vrot.slane %v182, 2
      %v184 = vadd.f32 %v182, %v183
      %v185 = vrot.slane %v184, 1
      %v186 = vadd.f32 %v184, %v185
      %s187 = vtos %v186
      %v188 = vstv %s187
      %189 = vst [vmem:[#allocation6] sm:$0xff] %v188
    $region25: #{tpu_custom_call.1} parent=1 // pred_fallthru
      _
    // Predicated region
    $region26: #{tpu_custom_call.1} parent=1 // pred_check
      _
    $region27: #{tpu_custom_call.1} parent=1 // pred_check_branch
      %191 = sbr.rel (0) target = $region29
    $region28: #{tpu_custom_call.1} parent=1 // pred_region
      %193 = vsyncadd [#allocation5], 0
      %s195 = sshll.u32 [#allocation6], 4
      %s196 = int_to_ptr.vmem [resolvable:$true] %s195
      %s197 = sshll.u32 %s3, 4
      %s198 = int_to_ptr.hbm [resolvable:$true] %s197
      %200 = dma.vmem_to_hbm [thread:$0]  %s196, 128, %s198, [#allocation5]
    $region29: #{tpu_custom_call.1} parent=1 // pred_fallthru
      _
    // Predicated region
    $region30: #{tpu_custom_call.1} parent=1 // pred_check
      _
    $region31: #{tpu_custom_call.1} parent=1 // pred_check_branch
      %202 = sbr.rel (0) target = $region33
    $region32: #{tpu_custom_call.1} parent=1 // pred_region
      %204 = dma.done [#allocation5], 128
    $region33: #{tpu_custom_call.1} parent=1 // pred_fallthru
      _
    %205 = vsyncpa [#allocation4], 1
    %206 = vsyncpa [#allocation5], 1

</llo_original>
